<compile_context>
chip_gen: v7x
topology: tpu7x:2x2x1
jax: 0.10.0
libtpu: 0.0.40
codegen_flags: <defaults>
</compile_context>

<pallas_src>
import jax
import jax.numpy as jnp
from jax import lax
from jax.experimental import pallas as pl
from jax.experimental.pallas import tpu as pltpu


def _vmem_capacity_bytes() -> int:
    """Physical per-core VMEM, with a conservative fallback (v7x = 64 MiB)."""
    try:
        info = pltpu.get_tpu_info()
        for attr in ("vmem_capacity_bytes", "vmem_bytes", "vmem_size_bytes"):
            val = getattr(info, attr, None)
            if val:
                return int(val)
    except Exception:
        pass
    return 64 * 2**20


def _adapter_kernel(conv_ref, x_ref, w1t_ref, w2t_ref, fb_ref, out_ref,
                    acc_ref, prim_ref, extra_ref):
    """One batch tile per grid step.

    conv_ref : SMEM (4,)   f32     [w_prev, w_center, w_next, conv_bias]
    x_ref    : VMEM (BT, E, S, D)  input batch tile
    w1t_ref  : VMEM (D, D) bf16    fusion weight, primary half, transposed
    w2t_ref  : VMEM (D, D) bf16    fusion weight, extra half, transposed
    fb_ref   : VMEM (1, D) f32     fusion bias
    out_ref  : VMEM (BT*S, D) f32  adapted output (flat over batch tile)
    acc_ref  : VMEM (S, D) f32     conv/ReLU accumulator (scratch)
    prim_ref : VMEM (BT*S, D) bf16 staged x_primary for the whole tile
    extra_ref: VMEM (BT*S, D) bf16 staged x_extra for the whole tile
    """
    bt, num_extra, seq, d = x_ref.shape

    # Scalar conv taps / bias, read once from SMEM.
    w_prev = conv_ref[0]
    w_cent = conv_ref[1]
    w_next = conv_ref[2]
    c_bias = conv_ref[3]
    inv_e = 1.0 / num_extra

    # pltpu.roll is cyclic; fold the conv's zero padding into per-row tap
    # weights (zero tap at the first / last sequence row) instead of masking
    # the rolled slabs with selects on every iteration.  Hoisted once.
    row = lax.broadcasted_iota(jnp.int32, (seq, d), 0)
    w_prev_v = jnp.where(row == 0, 0.0, w_prev)
    w_next_v = jnp.where(row == seq - 1, 0.0, w_next)

    def conv_slice(b, e):
        x_e = x_ref[b, e, :, :].astype(jnp.float32)        # (S, D)
        x_pm = pltpu.roll(x_e, shift=1, axis=0)            # x[s-1] (wrapped)
        x_pp = pltpu.roll(x_e, shift=seq - 1, axis=0)      # x[s+1] (wrapped)
        y = w_prev_v * x_pm + w_cent * x_e + w_next_v * x_pp + c_bias
        return jnp.maximum(y, 0.0)                         # conv -> ReLU

    # Process E in chunks: partial sums stay in registers; acc_ref sees one
    # read-modify-write per chunk instead of per slice.
    e_chunk = 4 if num_extra % 4 == 0 else (2 if num_extra % 2 == 0 else 1)
    n_chunks = num_extra // e_chunk

    def batch_body(b, carry):
        # Chunk 0 initialises the accumulator (no zero-fill pass).
        acc0 = conv_slice(b, 0)
        for j in range(1, e_chunk):
            acc0 = acc0 + conv_slice(b, j)

        if n_chunks == 1:
            x_extra = acc0 * inv_e                         # mean over E
        else:
            acc_ref[...] = acc0

            def chunk_body(c, cc):
                base = c * e_chunk
                s = conv_slice(b, base)
                for j in range(1, e_chunk):
                    s = s + conv_slice(b, base + j)
                acc_ref[...] += s
                return cc

            lax.fori_loop(1, n_chunks, chunk_body, 0,
                          unroll=min(n_chunks - 1, 2))
            x_extra = acc_ref[...] * inv_e                 # mean over E

        # Stage bf16 MXU operands for the batched fusion matmul.
        start = b * seq
        if not isinstance(start, int):
            start = pl.multiple_of(start, seq)
        extra_ref[pl.ds(start, seq), :] = x_extra.astype(extra_ref.dtype)
        prim_ref[pl.ds(start, seq), :] = x_ref[b, 0, :, :].astype(prim_ref.dtype)
        return carry

    if bt == 1:
        batch_body(0, 0)
    else:
        lax.fori_loop(0, bt, batch_body, 0)

    # fusion([x_primary | x_extra]) == x_primary @ W1^T + x_extra @ W2^T + b
    # Batched across the tile (M = bt*S): two MXU dots per grid step, bf16
    # operands, f32 accumulation, no lane-axis concatenate.
    fused = jnp.dot(prim_ref[...], w1t_ref[...], preferred_element_type=jnp.float32)
    fused = fused + jnp.dot(extra_ref[...], w2t_ref[...], preferred_element_type=jnp.float32)
    fused = fused + fb_ref[...]
    out_ref[...] = fused.astype(out_ref.dtype)


def four_dim_adapter_separate(x, conv_w, conv_b, fusion_w, fusion_b, *, b_tile=None):
    """Pallas implementation of the 'separate' strategy.

    x        : (B, E, S, D) float32 (or bfloat16)
    conv_w   : (1, 1, 3, 1) float32   (torch Conv2d weight layout)
    conv_b   : (1,)         float32
    fusion_w : (D, 2D)      float32   (torch Linear weight layout)
    fusion_b : (D,)         float32
    returns  : (B, S, D)    float32
    """
    B, E, S, D = x.shape
    x_item = x.dtype.itemsize

    # ---- budget-driven batch-tile selection ---------------------------------
    capacity = _vmem_capacity_bytes()
    # Scoped budget: ~32 MiB on v7x (64 MiB physical per TC), 48 MiB on v5e/v6e.
    budget = min(capacity // 2, 48 * 2**20)

    def needed_bytes(bt):
        in_block = bt * E * S * D * x_item              # double-buffered input tile
        out_block = bt * S * D * 4                      # double-buffered output tile
        scratch = S * D * 4 + 2 * (bt * S * D * 2)      # acc (f32) + prim/extra (bf16)
        consts = 2 * (2 * D * D * 2 + D * 4) + 64       # resident fusion weights + bias
        work = 8 * S * D * 4                            # tap vectors + conv temporaries
        return 2 * (in_block + out_block) + scratch + consts + work + (1 << 20)

    def block_ok(bt):                                   # (8,128) rule on the out block
        rows = bt * S
        return rows % 8 == 0 or rows == B * S

    if b_tile is None:
        divisors = [t for t in range(1, B + 1) if B % t == 0]
        valid = [t for t in divisors if block_ok(t)] or [B]
        fitting = [t for t in valid if needed_bytes(t) <= budget]
        if not fitting:
            # TODO(synk): seq tiling with a 1-row conv halo once even a single
            # (1, E, S, D) slab exceeds the per-generation VMEM budget.
            b_tile = min(valid)
        else:
            even = [t for t in fitting if (B // t) % 2 == 0]   # v7x: 2 TensorCores
            multi = [t for t in fitting if (B // t) >= 2]
            b_tile = max(even) if even else (max(multi) if multi else max(fitting))
    assert B % b_tile == 0 and block_ok(b_tile), "invalid b_tile"

    needed = needed_bytes(b_tile)
    vmem_limit = int(max(min(needed + (2 << 20), capacity - (4 << 20)), 16 << 20))

    # ---- parameter prep ------------------------------------------------------
    conv_params = jnp.concatenate(
        [conv_w.reshape(3), conv_b.reshape(1)]).astype(jnp.float32)        # (4,)
    fw = fusion_w.astype(jnp.float32)                                      # (D, 2D)
    w1t = fw[:, :D].T.astype(jnp.bfloat16)                                 # acts on x_primary
    w2t = fw[:, D:].T.astype(jnp.bfloat16)                                 # acts on x_extra
    fb = fusion_b.reshape(1, D).astype(jnp.float32)                        # (1, D)

    flops = B * E * S * D * 8 + B * S * D * 2 + 4 * B * S * D * D
    bytes_accessed = (B * E * S * D * x_item + B * S * D * 4
                      + 2 * (D * D * 2) + D * 4 + 16)
    cost = pl.CostEstimate(flops=flops, transcendentals=0,
                           bytes_accessed=bytes_accessed)

    grid = (B // b_tile,)
    out_flat = pl.pallas_call(
        _adapter_kernel,
        out_shape=jax.ShapeDtypeStruct((B * S, D), jnp.float32),
        grid_spec=pltpu.PrefetchScalarGridSpec(
            num_scalar_prefetch=0,
            grid=grid,
            in_specs=[
                pl.BlockSpec(memory_space=pltpu.MemorySpace.SMEM),          # conv taps + bias
                pl.BlockSpec((b_tile, E, S, D), lambda i: (i, 0, 0, 0)),    # x batch tile
                pl.BlockSpec((D, D), lambda i: (0, 0)),                     # W1^T (resident)
                pl.BlockSpec((D, D), lambda i: (0, 0)),                     # W2^T (resident)
                pl.BlockSpec((1, D), lambda i: (0, 0)),                     # fusion bias
            ],
            out_specs=pl.BlockSpec((b_tile * S, D), lambda i: (i, 0)),
            scratch_shapes=[
                pltpu.VMEM((S, D), jnp.float32),                # conv/ReLU accumulator
                pltpu.VMEM((b_tile * S, D), jnp.bfloat16),      # staged x_primary
                pltpu.VMEM((b_tile * S, D), jnp.bfloat16),      # staged x_extra
            ],
        ),
        compiler_params=pltpu.CompilerParams(
            dimension_semantics=("parallel",),
            vmem_limit_bytes=vmem_limit,
        ),
        cost_estimate=cost,
    )(conv_params, x, w1t, w2t, fb)

    return out_flat.reshape(B, S, D)


def four_dim_adapter_merge(x):
    """'merge' strategy: pure reshape glue (no compute)."""
    B, E, S, D = x.shape
    return x.reshape(B, E * S, D)


def _reference_separate(x, conv_w, conv_b, fusion_w, fusion_b, *, mxu_bf16=False):
    """Pure-JAX reference replicating the PyTorch forward (separate path)."""
    B, E, S, D = x.shape
    w = conv_w.reshape(3)
    xf = x.astype(jnp.float32)
    xp = jnp.pad(xf, ((0, 0), (0, 0), (1, 1), (0, 0)))
    conv = (w[0] * xp[:, :, 0:S, :]
            + w[1] * xp[:, :, 1:S + 1, :]
            + w[2] * xp[:, :, 2:S + 2, :]
            + conv_b[0])
    conv = jnp.maximum(conv, 0.0)
    x_extra = conv.mean(axis=1)
    x_primary = xf[:, 0, :, :]
    w1 = fusion_w[:, :D].T
    w2 = fusion_w[:, D:].T
    if mxu_bf16:
        x_primary = x_primary.astype(jnp.bfloat16)
        x_extra = x_extra.astype(jnp.bfloat16)
        w1 = w1.astype(jnp.bfloat16)
        w2 = w2.astype(jnp.bfloat16)
    return (jnp.dot(x_primary, w1, preferred_element_type=jnp.float32)
            + jnp.dot(x_extra, w2, preferred_element_type=jnp.float32)
            + fusion_b)


if __name__ == "__main__":
    # Small shapes consistent with the module: [batch, extra, seq, embed]
    B, E, S, D = 2, 4, 8, 32

    key = jax.random.PRNGKey(0)
    kx, kcw, kcb, kfw, kfb = jax.random.split(key, 5)

    x = jax.random.normal(kx, (B, E, S, D), dtype=jnp.float32)

    # Deterministic parameter init (shapes from nn.Conv2d(1,1,(3,1)) and
    # nn.Linear(2*D, D)).
    conv_w = 0.5 * jax.random.normal(kcw, (1, 1, 3, 1), dtype=jnp.float32)
    conv_b = 0.1 * jax.random.normal(kcb, (1,), dtype=jnp.float32)
    fusion_w = jax.random.normal(kfw, (D, 2 * D), dtype=jnp.float32) / jnp.sqrt(2.0 * D)
    fusion_b = 0.1 * jax.random.normal(kfb, (D,), dtype=jnp.float32)

    out = four_dim_adapter_separate(x, conv_w, conv_b, fusion_w, fusion_b)
    out = jax.block_until_ready(out)
    assert out.shape == (B, S, D)

    # Strict check against a reference that uses the same bf16 MXU operands.
    ref_bf16 = _reference_separate(x, conv_w, conv_b, fusion_w, fusion_b, mxu_bf16=True)
    assert jnp.allclose(out, ref_bf16, atol=5e-3, rtol=5e-3), "mismatch vs bf16 reference"

    # Loose check against the full-f32 PyTorch-equivalent reference.
    ref_f32 = _reference_separate(x, conv_w, conv_b, fusion_w, fusion_b)
    assert jnp.allclose(out, ref_f32, atol=5e-2, rtol=5e-2), "mismatch vs f32 reference"

    # Exercise the trivial 'merge' strategy glue as well.
    merged = jax.block_until_ready(four_dim_adapter_merge(x))
    assert merged.shape == (B, E * S, D)

    print("KERNEL_OK")
</pallas_src>

<mosaic_0001>
module attributes {stable_mosaic.version = 11 : i64} {
  func.func @_adapter_kernel(%arg0: i32, %arg1: memref<4xf32, #tpu.memory_space<smem>>, %arg2: memref<1x4x8x32xf32, #tpu.memory_space<vmem>>, %arg3: memref<32x32xbf16, #tpu.memory_space<vmem>>, %arg4: memref<32x32xbf16, #tpu.memory_space<vmem>>, %arg5: memref<1x32xf32, #tpu.memory_space<vmem>>, %arg6: memref<8x32xf32, #tpu.memory_space<vmem>>, %arg7: memref<8x32xf32, #tpu.memory_space<vmem>>, %arg8: memref<8x32xbf16, #tpu.memory_space<vmem>>, %arg9: memref<8x32xbf16, #tpu.memory_space<vmem>>) attributes {dimension_semantics = [#tpu.dimension_semantics<parallel>], iteration_bounds = array<i64: 2>, scalar_prefetch = 0 : i64, scratch_operands = 3 : i64, tpu.core_type = #tpu.core_type<tc>, window_params = [{transform_indices = @transform_0, window_bounds = array<i64: 4>}, {transform_indices = @transform_1, window_bounds = array<i64: 1, 4, 8, 32>}, {pipeline_mode = #tpu.pipeline_mode<synchronous>, transform_indices = @transform_2, window_bounds = array<i64: 32, 32>}, {pipeline_mode = #tpu.pipeline_mode<synchronous>, transform_indices = @transform_3, window_bounds = array<i64: 32, 32>}, {pipeline_mode = #tpu.pipeline_mode<synchronous>, transform_indices = @transform_4, window_bounds = array<i64: 1, 32>}, {transform_indices = @transform_5, window_bounds = array<i64: 8, 32>}]} {
    %c0 = arith.constant 0 : index
    %0 = memref.load %arg1[%c0] : memref<4xf32, #tpu.memory_space<smem>>
    %c1 = arith.constant 1 : index
    %1 = memref.load %arg1[%c1] : memref<4xf32, #tpu.memory_space<smem>>
    %c2 = arith.constant 2 : index
    %2 = memref.load %arg1[%c2] : memref<4xf32, #tpu.memory_space<smem>>
    %c3 = arith.constant 3 : index
    %3 = memref.load %arg1[%c3] : memref<4xf32, #tpu.memory_space<smem>>
    %4 = tpu.iota {dimensions = array<i32: 0>} : vector<8x32xi32>
    %c0_i32 = arith.constant 0 : i32
    %5 = vector.broadcast %c0_i32 : i32 to vector<8x32xi32>
    %6 = arith.cmpi eq, %4, %5 : vector<8x32xi32>
    %cst = arith.constant 0.000000e+00 : f32
    %7 = vector.broadcast %cst : f32 to vector<8x32xf32>
    %8 = vector.broadcast %0 : f32 to vector<8x32xf32>
    %9 = arith.select %6, %7, %8 : vector<8x32xi1>, vector<8x32xf32>
    %c7_i32 = arith.constant 7 : i32
    %10 = vector.broadcast %c7_i32 : i32 to vector<8x32xi32>
    %11 = arith.cmpi eq, %4, %10 : vector<8x32xi32>
    %cst_0 = arith.constant 0.000000e+00 : f32
    %12 = vector.broadcast %cst_0 : f32 to vector<8x32xf32>
    %13 = vector.broadcast %2 : f32 to vector<8x32xf32>
    %14 = arith.select %11, %12, %13 : vector<8x32xi1>, vector<8x32xf32>
    %c0_1 = arith.constant 0 : index
    %c0_2 = arith.constant 0 : index
    %c0_3 = arith.constant 0 : index
    %c0_4 = arith.constant 0 : index
    %15 = vector.load %arg2[%c0_1, %c0_2, %c0_3, %c0_4] : memref<1x4x8x32xf32, #tpu.memory_space<vmem>>, vector<1x1x8x32xf32>
    %16 = vector.shape_cast %15 : vector<1x1x8x32xf32> to vector<8x32xf32>
    %c1_i32 = arith.constant 1 : i32
    %17 = tpu.dynamic_rotate %16 by %c1_i32 dim 0 : vector<8x32xf32>, i32 -> vector<8x32xf32>
    %c7_i32_5 = arith.constant 7 : i32
    %18 = tpu.dynamic_rotate %16 by %c7_i32_5 dim 0 : vector<8x32xf32>, i32 -> vector<8x32xf32>
    %19 = arith.mulf %9, %17 : vector<8x32xf32>
    %20 = vector.broadcast %1 : f32 to vector<8x32xf32>
    %21 = arith.mulf %20, %16 : vector<8x32xf32>
    %22 = arith.addf %19, %21 : vector<8x32xf32>
    %23 = arith.mulf %14, %18 : vector<8x32xf32>
    %24 = arith.addf %22, %23 : vector<8x32xf32>
    %25 = vector.broadcast %3 : f32 to vector<8x32xf32>
    %26 = arith.addf %24, %25 : vector<8x32xf32>
    %cst_6 = arith.constant 0.000000e+00 : f32
    %27 = vector.broadcast %cst_6 : f32 to vector<8x32xf32>
    %28 = arith.maximumf %26, %27 : vector<8x32xf32>
    %c0_7 = arith.constant 0 : index
    %c1_8 = arith.constant 1 : index
    %c0_9 = arith.constant 0 : index
    %c0_10 = arith.constant 0 : index
    %29 = vector.load %arg2[%c0_7, %c1_8, %c0_9, %c0_10] : memref<1x4x8x32xf32, #tpu.memory_space<vmem>>, vector<1x1x8x32xf32>
    %30 = vector.shape_cast %29 : vector<1x1x8x32xf32> to vector<8x32xf32>
    %c1_i32_11 = arith.constant 1 : i32
    %31 = tpu.dynamic_rotate %30 by %c1_i32_11 dim 0 : vector<8x32xf32>, i32 -> vector<8x32xf32>
    %c7_i32_12 = arith.constant 7 : i32
    %32 = tpu.dynamic_rotate %30 by %c7_i32_12 dim 0 : vector<8x32xf32>, i32 -> vector<8x32xf32>
    %33 = arith.mulf %9, %31 : vector<8x32xf32>
    %34 = vector.broadcast %1 : f32 to vector<8x32xf32>
    %35 = arith.mulf %34, %30 : vector<8x32xf32>
    %36 = arith.addf %33, %35 : vector<8x32xf32>
    %37 = arith.mulf %14, %32 : vector<8x32xf32>
    %38 = arith.addf %36, %37 : vector<8x32xf32>
    %39 = vector.broadcast %3 : f32 to vector<8x32xf32>
    %40 = arith.addf %38, %39 : vector<8x32xf32>
    %cst_13 = arith.constant 0.000000e+00 : f32
    %41 = vector.broadcast %cst_13 : f32 to vector<8x32xf32>
    %42 = arith.maximumf %40, %41 : vector<8x32xf32>
    %43 = arith.addf %28, %42 : vector<8x32xf32>
    %c0_14 = arith.constant 0 : index
    %c2_15 = arith.constant 2 : index
    %c0_16 = arith.constant 0 : index
    %c0_17 = arith.constant 0 : index
    %44 = vector.load %arg2[%c0_14, %c2_15, %c0_16, %c0_17] : memref<1x4x8x32xf32, #tpu.memory_space<vmem>>, vector<1x1x8x32xf32>
    %45 = vector.shape_cast %44 : vector<1x1x8x32xf32> to vector<8x32xf32>
    %c1_i32_18 = arith.constant 1 : i32
    %46 = tpu.dynamic_rotate %45 by %c1_i32_18 dim 0 : vector<8x32xf32>, i32 -> vector<8x32xf32>
    %c7_i32_19 = arith.constant 7 : i32
    %47 = tpu.dynamic_rotate %45 by %c7_i32_19 dim 0 : vector<8x32xf32>, i32 -> vector<8x32xf32>
    %48 = arith.mulf %9, %46 : vector<8x32xf32>
    %49 = vector.broadcast %1 : f32 to vector<8x32xf32>
    %50 = arith.mulf %49, %45 : vector<8x32xf32>
    %51 = arith.addf %48, %50 : vector<8x32xf32>
    %52 = arith.mulf %14, %47 : vector<8x32xf32>
    %53 = arith.addf %51, %52 : vector<8x32xf32>
    %54 = vector.broadcast %3 : f32 to vector<8x32xf32>
    %55 = arith.addf %53, %54 : vector<8x32xf32>
    %cst_20 = arith.constant 0.000000e+00 : f32
    %56 = vector.broadcast %cst_20 : f32 to vector<8x32xf32>
    %57 = arith.maximumf %55, %56 : vector<8x32xf32>
    %58 = arith.addf %43, %57 : vector<8x32xf32>
    %c0_21 = arith.constant 0 : index
    %c3_22 = arith.constant 3 : index
    %c0_23 = arith.constant 0 : index
    %c0_24 = arith.constant 0 : index
    %59 = vector.load %arg2[%c0_21, %c3_22, %c0_23, %c0_24] : memref<1x4x8x32xf32, #tpu.memory_space<vmem>>, vector<1x1x8x32xf32>
    %60 = vector.shape_cast %59 : vector<1x1x8x32xf32> to vector<8x32xf32>
    %c1_i32_25 = arith.constant 1 : i32
    %61 = tpu.dynamic_rotate %60 by %c1_i32_25 dim 0 : vector<8x32xf32>, i32 -> vector<8x32xf32>
    %c7_i32_26 = arith.constant 7 : i32
    %62 = tpu.dynamic_rotate %60 by %c7_i32_26 dim 0 : vector<8x32xf32>, i32 -> vector<8x32xf32>
    %63 = arith.mulf %9, %61 : vector<8x32xf32>
    %64 = vector.broadcast %1 : f32 to vector<8x32xf32>
    %65 = arith.mulf %64, %60 : vector<8x32xf32>
    %66 = arith.addf %63, %65 : vector<8x32xf32>
    %67 = arith.mulf %14, %62 : vector<8x32xf32>
    %68 = arith.addf %66, %67 : vector<8x32xf32>
    %69 = vector.broadcast %3 : f32 to vector<8x32xf32>
    %70 = arith.addf %68, %69 : vector<8x32xf32>
    %cst_27 = arith.constant 0.000000e+00 : f32
    %71 = vector.broadcast %cst_27 : f32 to vector<8x32xf32>
    %72 = arith.maximumf %70, %71 : vector<8x32xf32>
    %73 = arith.addf %58, %72 : vector<8x32xf32>
    %cst_28 = arith.constant 2.500000e-01 : f32
    %74 = vector.broadcast %cst_28 : f32 to vector<8x32xf32>
    %75 = arith.mulf %73, %74 : vector<8x32xf32>
    %76 = arith.truncf %75 : vector<8x32xf32> to vector<8x32xbf16>
    %c0_29 = arith.constant 0 : index
    %c0_30 = arith.constant 0 : index
    %77 = vector.load %arg9[%c0_29, %c0_30] : memref<8x32xbf16, #tpu.memory_space<vmem>>, vector<8x32xbf16>
    tpu.vector_store %arg9[%c0_29, %c0_30], %76 {strides = array<i32>} : memref<8x32xbf16, #tpu.memory_space<vmem>>, vector<8x32xbf16>,
    %c0_31 = arith.constant 0 : index
    %c0_32 = arith.constant 0 : index
    %c0_33 = arith.constant 0 : index
    %c0_34 = arith.constant 0 : index
    %78 = vector.load %arg2[%c0_31, %c0_32, %c0_33, %c0_34] : memref<1x4x8x32xf32, #tpu.memory_space<vmem>>, vector<1x1x8x32xf32>
    %79 = vector.shape_cast %78 : vector<1x1x8x32xf32> to vector<8x32xf32>
    %80 = arith.truncf %79 : vector<8x32xf32> to vector<8x32xbf16>
    %c0_35 = arith.constant 0 : index
    %c0_36 = arith.constant 0 : index
    %81 = vector.load %arg8[%c0_35, %c0_36] : memref<8x32xbf16, #tpu.memory_space<vmem>>, vector<8x32xbf16>
    tpu.vector_store %arg8[%c0_35, %c0_36], %80 {strides = array<i32>} : memref<8x32xbf16, #tpu.memory_space<vmem>>, vector<8x32xbf16>,
    %c0_37 = arith.constant 0 : index
    %c0_38 = arith.constant 0 : index
    %82 = vector.load %arg8[%c0_37, %c0_38] : memref<8x32xbf16, #tpu.memory_space<vmem>>, vector<8x32xbf16>
    %c0_39 = arith.constant 0 : index
    %c0_40 = arith.constant 0 : index
    %83 = vector.load %arg3[%c0_39, %c0_40] : memref<32x32xbf16, #tpu.memory_space<vmem>>, vector<32x32xbf16>
    %cst_41 = arith.constant dense<0.000000e+00> : vector<8x32xf32>
    %84 = tpu.matmul %82, %83, %cst_41 {dimension_numbers = #tpu.dot_dimension_numbers<[1], [0], [0], [1], [0, 0, 1, 1], [], []>} : vector<8x32xbf16>, vector<32x32xbf16>, vector<8x32xf32> -> vector<8x32xf32>
    %c0_42 = arith.constant 0 : index
    %c0_43 = arith.constant 0 : index
    %85 = vector.load %arg9[%c0_42, %c0_43] : memref<8x32xbf16, #tpu.memory_space<vmem>>, vector<8x32xbf16>
    %c0_44 = arith.constant 0 : index
    %c0_45 = arith.constant 0 : index
    %86 = vector.load %arg4[%c0_44, %c0_45] : memref<32x32xbf16, #tpu.memory_space<vmem>>, vector<32x32xbf16>
    %cst_46 = arith.constant dense<0.000000e+00> : vector<8x32xf32>
    %87 = tpu.matmul %85, %86, %cst_46 {dimension_numbers = #tpu.dot_dimension_numbers<[1], [0], [0], [1], [0, 0, 1, 1], [], []>} : vector<8x32xbf16>, vector<32x32xbf16>, vector<8x32xf32> -> vector<8x32xf32>
    %88 = arith.addf %84, %87 : vector<8x32xf32>
    %c0_47 = arith.constant 0 : index
    %c0_48 = arith.constant 0 : index
    %89 = vector.load %arg5[%c0_47, %c0_48] : memref<1x32xf32, #tpu.memory_space<vmem>>, vector<1x32xf32>
    %90 = vector.broadcast %89 : vector<1x32xf32> to vector<8x32xf32>
    %91 = arith.addf %88, %90 : vector<8x32xf32>
    %c0_49 = arith.constant 0 : index
    %c0_50 = arith.constant 0 : index
    %92 = vector.load %arg6[%c0_49, %c0_50] : memref<8x32xf32, #tpu.memory_space<vmem>>, vector<8x32xf32>
    tpu.vector_store %arg6[%c0_49, %c0_50], %91 {strides = array<i32>} : memref<8x32xf32, #tpu.memory_space<vmem>>, vector<8x32xf32>,
    return
  }
  func.func @transform_0(%arg0: i32) -> i32 {
    %c0_i32 = arith.constant 0 : i32
    %c0_i32_0 = arith.constant 0 : i32
    return %c0_i32 : i32
  }
  func.func @transform_1(%arg0: i32) -> (i32, i32, i32, i32) {
    %c0_i32 = arith.constant 0 : i32
    %c0_i32_0 = arith.constant 0 : i32
    %c0_i32_1 = arith.constant 0 : i32
    %c0_i32_2 = arith.constant 0 : i32
    return %arg0, %c0_i32, %c0_i32_0, %c0_i32_1 : i32, i32, i32, i32
  }
  func.func @transform_2(%arg0: i32) -> (i32, i32) {
    %c0_i32 = arith.constant 0 : i32
    %c0_i32_0 = arith.constant 0 : i32
    %c0_i32_1 = arith.constant 0 : i32
    return %c0_i32, %c0_i32_0 : i32, i32
  }
  func.func @transform_3(%arg0: i32) -> (i32, i32) {
    %c0_i32 = arith.constant 0 : i32
    %c0_i32_0 = arith.constant 0 : i32
    %c0_i32_1 = arith.constant 0 : i32
    return %c0_i32, %c0_i32_0 : i32, i32
  }
  func.func @transform_4(%arg0: i32) -> (i32, i32) {
    %c0_i32 = arith.constant 0 : i32
    %c0_i32_0 = arith.constant 0 : i32
    %c0_i32_1 = arith.constant 0 : i32
    return %c0_i32, %c0_i32_0 : i32, i32
  }
  func.func @transform_5(%arg0: i32) -> (i32, i32) {
    %c0_i32 = arith.constant 0 : i32
    %c0_i32_0 = arith.constant 0 : i32
    return %arg0, %c0_i32 : i32, i32
  }
}

</mosaic_0001>

<llo_original>
// kernel: tpu_custom_call.1
$region0: #{tpu_custom_call.1}
  #allocation0 [shape = 'u32[]', space=smem, size = 0x4, offset = 0x4, fixed_abs, tag = 'smem constant byte address 0x4 - core index']
  #allocation1 [shape = 'u32[144,128]{1,0:T(1,128)}', space=vmem, size = 0x12000, scoped, tag = 'internal scratch']
  #allocation2 [shape = 'f32[8,32]{1,0:T(8,128)}', space=vmem, size = 0x1000, scoped, tag = 'scratch operand']
  #allocation3 [shape = 'bf16[8,32]{1,0:T(8,128)(2,1)}', space=vmem, size = 0x800, scoped, tag = 'scratch operand']
  #allocation4 [shape = 'bf16[8,32]{1,0:T(8,128)(2,1)}', space=vmem, size = 0x800, scoped, tag = 'scratch operand']
  %s0 = inlined_call_operand.hbm [shape: f32[4], index: 0, kind: input, shape index: {}]
  %s1 = inlined_call_operand.hbm [shape: f32[2,4,8,32], index: 1, kind: input, shape index: {}]
  %s2 = inlined_call_operand.hbm [shape: bf16[32,32], index: 2, kind: input, shape index: {}]
  %s3 = inlined_call_operand.hbm [shape: bf16[32,32], index: 3, kind: input, shape index: {}]
  %s4 = inlined_call_operand.vmem [shape: f32[1,32], index: 4, kind: input, shape index: {}]
  %s5 = inlined_call_operand.hbm [shape: f32[16,32], index: 5, kind: output, shape index: {}]
  %s6 = sld [smem:[#allocation0]]
  $region69: #{tpu_custom_call.1} parent=0
    _
  %s8 = ssub.s32 1, %s6
  %s9 = scalar_select 0, %s8, %s6
  $region1: #{tpu_custom_call.1} parent=0
    #allocation5 [shape = 'u8[512]{0}', space=smem, size = 0x200, scoped, tag = 'input window, operand 0, single buffered']
    #allocation6 [shape = 's32[2]{0}', space=sflag, size = 0x8, scoped, tag = 'scoped memory for tpu_custom_call.1']
    #allocation7 [shape = 's32[2]{0}', space=sflag, size = 0x8, scoped, tag = 'scoped memory for tpu_custom_call.1']
    #allocation8 [shape = 's32[2]{0}', space=sflag, size = 0x8, scoped, tag = 'scoped memory for tpu_custom_call.1']
    #allocation9 [shape = 'u8[32768]{0}', space=vmem, size = 0x8000, scoped, tag = 'input window, operand 1']
    #allocation10 [shape = 'u8[8192]{0}', space=vmem, size = 0x2000, scoped, tag = 'input window, operand 2, single buffered']
    #allocation11 [shape = 's32[1]{0}', space=sflag, size = 0x4, scoped, tag = 'scoped memory for tpu_custom_call.1']
    #allocation12 [shape = 'u8[8192]{0}', space=vmem, size = 0x2000, scoped, tag = 'input window, operand 3, single buffered']
    #allocation13 [shape = 'u8[8192]{0}', space=vmem, size = 0x2000, scoped, tag = 'output window, operand 0']
    %10 = vsyncpa [#allocation8], 0
    %11 = vsyncpa [#allocation6], 0
    %s12 = scalar_lea.sflag [#allocation6], 1
    %13 = vsyncpa %s12, 0
    %14 = vsyncpa [#allocation11], 0
    %15 = vsyncpa [#allocation7], 0
    %s16 = scalar_lea.sflag [#allocation7], 1
    %17 = vsyncpa %s16, 0
    loop: start=0, step=1, limit=4
    $region2: #{tpu_custom_call.1} parent=1 // loop_pre_header
      _
    $region3: #{tpu_custom_call.1} parent=1 // loop_header
      %s19 = sphi 0, %s23
      %p20 = scmp.ge.s32.totalorder %s19, 4
      %s27 = sphi 0, %s27
      %s29 = sphi 0, %s27
      %s30 = sphi 0, %s29
      %s44 = sphi 0, %s30
      %s50 = sphi 0, %s52
      %s53 = sphi 0, %s50
      %s54 = sphi 0, %s53
      %s70 = sphi 0, %s54
      %s74 = sphi 0, %s74
      %s76 = sphi 0, %s74
      %s77 = sphi 0, %s76
      %s91 = sphi 0, %s77
      %s95 = sphi 0, %s95
      %s97 = sphi 0, %s95
      %s98 = sphi 0, %s97
      %s112 = sphi 0, %s98
      %s116 = sphi 0, %s116
      %s118 = sphi 0, %s116
      %s119 = sphi 0, %s118
      %s133 = sphi 0, %s119
      %s139 = sphi 0, %s141
      %s142 = sphi 0, %s139
      %s143 = sphi 0, %s142
      %s159 = sphi 0, %s143
    $region4: #{tpu_custom_call.1} parent=1 // loop_header_branch
      %22 = sbr.rel (%p20) target = $region8
    $region5: #{tpu_custom_call.1} parent=1 // loop_body
      %s24 = ssub.s32 %s19, 1
      %s25 = ssub.s32 %s19, 2
      %s26 = sadd.s32 %s19, 1
      %s28 = sadd.s32 %s27, 1
      %p31 = scmp.eq.s32.totalorder %s19, 1
      %p32 = scmp.ne.s32.totalorder %s27, %s29
      %p33 = scmp.eq.s32.totalorder %s19, 0
      %p34 = por %p32, %p33
      %p35 = scmp.ne.s32.totalorder %s27, %s29
      %p36 = scmp.eq.s32.totalorder %s24, 1
      %p37 = por %p35, %p36
      %p38 = scmp.ne.s32.totalorder %s29, %s30
      %p39 = scmp.eq.s32.totalorder %s24, 0
      %p40 = por %p38, %p39
      %p41 = scmp.ne.s32.totalorder %s29, %s30
      %p42 = scmp.eq.s32.totalorder %s25, 1
      %p43 = por %p41, %p42
      %p45 = scmp.ne.s32.totalorder %s30, %s44
      %p46 = scmp.eq.s32.totalorder %s25, 0
      %p47 = por %p45, %p46
      %s48 = ssub.s32 %s19, %s26
      %p49 = scmp.eq.s32.totalorder %s48, 0
      %s51 = sadd.s32 %s50, 1
      %s52 = scalar_select %p49, %s50, %s51
      %p55 = pneg %p49
      %p56 = scmp.eq.s32.totalorder %s19, 1
      %p57 = por %p55, %p56
      %p58 = scmp.ne.s32.totalorder %s50, %s53
      %p59 = scmp.eq.s32.totalorder %s19, 0
      %p60 = por %p58, %p59
      %p61 = scmp.ne.s32.totalorder %s50, %s53
      %p62 = scmp.eq.s32.totalorder %s24, 1
      %p63 = por %p61, %p62
      %p64 = scmp.ne.s32.totalorder %s53, %s54
      %p65 = scmp.eq.s32.totalorder %s24, 0
      %p66 = por %p64, %p65
      %p67 = scmp.ne.s32.totalorder %s53, %s54
      %p68 = scmp.eq.s32.totalorder %s25, 1
      %p69 = por %p67, %p68
      %p71 = scmp.ne.s32.totalorder %s54, %s70
      %p72 = scmp.eq.s32.totalorder %s25, 0
      %p73 = por %p71, %p72
      %s75 = sadd.s32 %s74, 1
      %p78 = scmp.eq.s32.totalorder %s19, 1
      %p79 = scmp.ne.s32.totalorder %s74, %s76
      %p80 = scmp.eq.s32.totalorder %s19, 0
      %p81 = por %p79, %p80
      %p82 = scmp.ne.s32.totalorder %s74, %s76
      %p83 = scmp.eq.s32.totalorder %s24, 1
      %p84 = por %p82, %p83
      %p85 = scmp.ne.s32.totalorder %s76, %s77
      %p86 = scmp.eq.s32.totalorder %s24, 0
      %p87 = por %p85, %p86
      %p88 = scmp.ne.s32.totalorder %s76, %s77
      %p89 = scmp.eq.s32.totalorder %s25, 1
      %p90 = por %p88, %p89
      %p92 = scmp.ne.s32.totalorder %s77, %s91
      %p93 = scmp.eq.s32.totalorder %s25, 0
      %p94 = por %p92, %p93
      %s96 = sadd.s32 %s95, 1
      %p99 = scmp.eq.s32.totalorder %s19, 1
      %p100 = scmp.ne.s32.totalorder %s95, %s97
      %p101 = scmp.eq.s32.totalorder %s19, 0
      %p102 = por %p100, %p101
      %p103 = scmp.ne.s32.totalorder %s95, %s97
      %p104 = scmp.eq.s32.totalorder %s24, 1
      %p105 = por %p103, %p104
      %p106 = scmp.ne.s32.totalorder %s97, %s98
      %p107 = scmp.eq.s32.totalorder %s24, 0
      %p108 = por %p106, %p107
      %p109 = scmp.ne.s32.totalorder %s97, %s98
      %p110 = scmp.eq.s32.totalorder %s25, 1
      %p111 = por %p109, %p110
      %p113 = scmp.ne.s32.totalorder %s98, %s112
      %p114 = scmp.eq.s32.totalorder %s25, 0
      %p115 = por %p113, %p114
      %s117 = sadd.s32 %s116, 1
      %p120 = scmp.eq.s32.totalorder %s19, 1
      %p121 = scmp.ne.s32.totalorder %s116, %s118
      %p122 = scmp.eq.s32.totalorder %s19, 0
      %p123 = por %p121, %p122
      %p124 = scmp.ne.s32.totalorder %s116, %s118
      %p125 = scmp.eq.s32.totalorder %s24, 1
      %p126 = por %p124, %p125
      %p127 = scmp.ne.s32.totalorder %s118, %s119
      %p128 = scmp.eq.s32.totalorder %s24, 0
      %p129 = por %p127, %p128
      %p130 = scmp.ne.s32.totalorder %s118, %s119
      %p131 = scmp.eq.s32.totalorder %s25, 1
      %p132 = por %p130, %p131
      %p134 = scmp.ne.s32.totalorder %s119, %s133
      %p135 = scmp.eq.s32.totalorder %s25, 0
      %p136 = por %p134, %p135
      %s137 = ssub.s32 %s19, %s26
      %p138 = scmp.eq.s32.totalorder %s137, 0
      %s140 = sadd.s32 %s139, 1
      %s141 = scalar_select %p138, %s139, %s140
      %p144 = pneg %p138
      %p145 = scmp.eq.s32.totalorder %s19, 1
      %p146 = por %p144, %p145
      %p147 = scmp.ne.s32.totalorder %s139, %s142
      %p148 = scmp.eq.s32.totalorder %s19, 0
      %p149 = por %p147, %p148
      %p150 = scmp.ne.s32.totalorder %s139, %s142
      %p151 = scmp.eq.s32.totalorder %s24, 1
      %p152 = por %p150, %p151
      %p153 = scmp.ne.s32.totalorder %s142, %s143
      %p154 = scmp.eq.s32.totalorder %s24, 0
      %p155 = por %p153, %p154
      %p156 = scmp.ne.s32.totalorder %s142, %s143
      %p157 = scmp.eq.s32.totalorder %s25, 1
      %p158 = por %p156, %p157
      %p160 = scmp.ne.s32.totalorder %s143, %s159
      %p161 = scmp.eq.s32.totalorder %s25, 0
      %p162 = por %p160, %p161
      %p163 = scmp.le.s32.totalorder 1, %s19
      %p164 = scmp.lt.s32.totalorder %s19, 3
      %p165 = pnand %p163, %p164
      %p166 = pneg %p165
      // Predicated region
      $region9: #{tpu_custom_call.1} parent=5 // pred_check
        _
      $region10: #{tpu_custom_call.1} parent=5 // pred_check_branch
        %168 = sbr.rel (%p165) target = $region12
      $region11: #{tpu_custom_call.1} parent=5 // pred_region
        %s169 = ssub.s32 %s19, 1
        // Predicated region
        $region13: #{tpu_custom_call.1} parent=11 // pred_check
          %p170 = pneg %p40
        $region14: #{tpu_custom_call.1} parent=11 // pred_check_branch
          %172 = sbr.rel (%p170) target = $region16
        $region15: #{tpu_custom_call.1} parent=11 // pred_region
          %s174 = ssub.s32 16, 16
          %175 = vsyncadd [#allocation8], %s174
          %178 = dma.hbm_to_smem %s0, 16, [#allocation5], [#allocation8]
        $region16: #{tpu_custom_call.1} parent=11 // pred_fallthru
          _
        // Predicated region
        $region17: #{tpu_custom_call.1} parent=11 // pred_check
          %p179 = pneg %p87
        $region18: #{tpu_custom_call.1} parent=11 // pred_check_branch
          %181 = sbr.rel (%p179) target = $region20
        $region19: #{tpu_custom_call.1} parent=11 // pred_region
          %s183 = ssub.s32 256, 256
          %184 = vsyncadd [#allocation11], %s183
          %s185 = sshll.u32 [#allocation10], 4
          %s186 = int_to_ptr.vmem [resolvable:$true] %s185
          %191 = dma.hbm_to_vmem [thread:$0]  %s2, 256, %s186, [#allocation11], 64, 64, 4
        $region20: #{tpu_custom_call.1} parent=11 // pred_fallthru
          _
        // Predicated region
        $region21: #{tpu_custom_call.1} parent=11 // pred_check
          %p192 = pneg %p108
        $region22: #{tpu_custom_call.1} parent=11 // pred_check_branch
          %194 = sbr.rel (%p192) target = $region24
        $region23: #{tpu_custom_call.1} parent=11 // pred_region
          %s196 = ssub.s32 256, 256
          %197 = vsyncadd [#allocation11], %s196
          %s198 = sshll.u32 [#allocation12], 4
          %s199 = int_to_ptr.vmem [resolvable:$true] %s198
          %204 = dma.hbm_to_vmem [thread:$0]  %s3, 256, %s199, [#allocation11], 64, 64, 4
        $region24: #{tpu_custom_call.1} parent=11 // pred_fallthru
          _
        // Predicated region
        $region25: #{tpu_custom_call.1} parent=11 // pred_check
          %p205 = pneg %p129
        $region26: #{tpu_custom_call.1} parent=11 // pred_check_branch
          %207 = sbr.rel (%p205) target = $region28
        $region27: #{tpu_custom_call.1} parent=11 // pred_region
          _
        $region28: #{tpu_custom_call.1} parent=11 // pred_fallthru
          _
      $region12: #{tpu_custom_call.1} parent=5 // pred_fallthru
        _
      %p208 = scmp.lt.s32.totalorder %s19, 2
      // Predicated region
      $region29: #{tpu_custom_call.1} parent=5 // pred_check
        %p209 = pneg %p208
      $region30: #{tpu_custom_call.1} parent=5 // pred_check_branch
        %211 = sbr.rel (%p209) target = $region32
      $region31: #{tpu_custom_call.1} parent=5 // pred_region
        // Predicated region
        $region33: #{tpu_custom_call.1} parent=31 // pred_check
          %p212 = pneg %p60
        $region34: #{tpu_custom_call.1} parent=31 // pred_check_branch
          %214 = sbr.rel (%p212) target = $region36
        $region35: #{tpu_custom_call.1} parent=31 // pred_region
          %s215 = sand.u32 %s50, 1
          %s216 = scalar_lea.sflag [#allocation6], %s215
          %s217 = sand.u32 %s50, 1
          %s218 = smul.addr %s217, 32
          %s219 = scalar_lea.vmem [#allocation9], %s218
          %s221 = ssub.s32 512, 512
          %222 = vsyncadd %s216, %s221
          %s223 = smul.addr %s19, 4
          %s224 = smul.addr %s223, 128
          %s225 = scalar_lea.hbm %s1, %s224
          %s226 = sshll.u32 %s219, 4
          %s227 = int_to_ptr.vmem [resolvable:$true] %s226
          %232 = dma.hbm_to_vmem [thread:$0]  %s225, 512, %s227, %s216, 128, 128, 8
        $region36: #{tpu_custom_call.1} parent=31 // pred_fallthru
          _
      $region32: #{tpu_custom_call.1} parent=5 // pred_fallthru
        _
      %p233 = scmp.le.s32.totalorder 1, %s19
      %p234 = scmp.lt.s32.totalorder %s19, 3
      %p235 = pnand %p233, %p234
      %p236 = pneg %p235
      // Predicated region
      $region37: #{tpu_custom_call.1} parent=5 // pred_check
        _
      $region38: #{tpu_custom_call.1} parent=5 // pred_check_branch
        %238 = sbr.rel (%p235) target = $region40
      $region39: #{tpu_custom_call.1} parent=5 // pred_region
        %s239 = ssub.s32 %s19, 1
        // Predicated region
        $region41: #{tpu_custom_call.1} parent=39 // pred_check
          %p240 = pneg %p40
        $region42: #{tpu_custom_call.1} parent=39 // pred_check_branch
          %242 = sbr.rel (%p240) target = $region44
        $region43: #{tpu_custom_call.1} parent=39 // pred_region
          %243 = dma.done [#allocation8], 16
        $region44: #{tpu_custom_call.1} parent=39 // pred_fallthru
          _
        %s244 = sand.u32 %s53, 1
        %s245 = scalar_lea.sflag [#allocation6], %s244
        %s246 = sand.u32 %s53, 1
        %s247 = smul.addr %s246, 32
        %s248 = scalar_lea.vmem [#allocation9], %s247
        // Predicated region
        $region45: #{tpu_custom_call.1} parent=39 // pred_check
          %p249 = pneg %p66
        $region46: #{tpu_custom_call.1} parent=39 // pred_check_branch
          %251 = sbr.rel (%p249) target = $region48
        $region47: #{tpu_custom_call.1} parent=39 // pred_region
          %252 = dma.done %s245, 512
        $region48: #{tpu_custom_call.1} parent=39 // pred_fallthru
          _
        // Predicated region
        $region49: #{tpu_custom_call.1} parent=39 // pred_check
          %p253 = pneg %p87
        $region50: #{tpu_custom_call.1} parent=39 // pred_check_branch
          %255 = sbr.rel (%p253) target = $region52
        $region51: #{tpu_custom_call.1} parent=39 // pred_region
          %256 = dma.done [#allocation11], 256
        $region52: #{tpu_custom_call.1} parent=39 // pred_fallthru
          _
        // Predicated region
        $region53: #{tpu_custom_call.1} parent=39 // pred_check
          %p257 = pneg %p108
        $region54: #{tpu_custom_call.1} parent=39 // pred_check_branch
          %259 = sbr.rel (%p257) target = $region56
        $region55: #{tpu_custom_call.1} parent=39 // pred_region
          %260 = dma.done [#allocation11], 256
        $region56: #{tpu_custom_call.1} parent=39 // pred_fallthru
          _
        %261 = sfence
        %p262 = pneg %p40
        %p263 = pneg %p37
        %s264 = sand.u32 %s53, 1
        %s265 = scalar_lea.sflag [#allocation6], %s264
        %s266 = sand.u32 %s53, 1
        %s267 = smul.addr %s266, 32
        %s268 = scalar_lea.vmem [#allocation9], %s267
        %p269 = pneg %p66
        %p270 = pneg %p63
        %p271 = pneg %p87
        %p272 = pneg %p84
        %p273 = pneg %p108
        %p274 = pneg %p105
        %p275 = pneg %p129
        %p276 = pneg %p126
        %p277 = pneg %p155
        %p278 = pneg %p152
        %s279 = sand.u32 %s142, 1
        %s280 = scalar_lea.sflag [#allocation7], %s279
        %s281 = sand.u32 %s142, 1
        %s282 = smul.addr %s281, 8
        %s283 = scalar_lea.vmem [#allocation13], %s282
        %s285 = sld [smem:[#allocation5]]
        %s286 = sld [smem:[#allocation5 + $0x1]]
        %s287 = sld [smem:[#allocation5 + $0x2]]
        %s288 = sld [smem:[#allocation5 + $0x3]]
        %v289 = vlaneseq
        %v290 = vshrl.u32 %v289, 7
        %vm291 = vcmp.eq.s32.totalorder %v290, 0
        %v292 = vstv %s285
        %v293 = vsel %vm291, 0.0, %v292
        %vm294 = vcmp.eq.s32.totalorder %v290, 7
        %v295 = vstv %s287
        %v296 = vsel %vm294, 0.0, %v295
        %v297 = vld [vmem:[%s248] sm:$0xff]
        %v298 = vrot.slane %v297, 7
        %v299 = vrot.slane %v297, 1
        %v300 = vmul.f32 %v293, %v298
        %v301 = vstv %s286
        %v302 = vmul.f32 %v301, %v297
        %v303 = vadd.f32 %v300, %v302
        %v304 = vmul.f32 %v296, %v299
        %v305 = vadd.f32 %v303, %v304
        %v306 = vstv %s288
        %v307 = vadd.f32 %v305, %v306
        %v308 = vmax.f32 %v307, 0.0
        %s309 = scalar_lea.vmem %s248, 8 [#allocation9]
        %v310 = vld [vmem:[%s309] sm:$0xff]
        %v311 = vrot.slane %v310, 7
        %v312 = vrot.slane %v310, 1
        %v313 = vmul.f32 %v293, %v311
        %v314 = vmul.f32 %v301, %v310
        %v315 = vadd.f32 %v313, %v314
        %v316 = vmul.f32 %v296, %v312
        %v317 = vadd.f32 %v315, %v316
        %v318 = vadd.f32 %v317, %v306
        %v319 = vmax.f32 %v318, 0.0
        %v320 = vadd.f32 %v308, %v319
        %s321 = scalar_lea.vmem %s248, 16 [#allocation9]
        %v322 = vld [vmem:[%s321] sm:$0xff]
        %v323 = vrot.slane %v322, 7
        %v324 = vrot.slane %v322, 1
        %v325 = vmul.f32 %v293, %v323
        %v326 = vmul.f32 %v301, %v322
        %v327 = vadd.f32 %v325, %v326
        %v328 = vmul.f32 %v296, %v324
        %v329 = vadd.f32 %v327, %v328
        %v330 = vadd.f32 %v329, %v306
        %v331 = vmax.f32 %v330, 0.0
        %v332 = vadd.f32 %v320, %v331
        %s333 = scalar_lea.vmem %s248, 24 [#allocation9]
        %v334 = vld [vmem:[%s333] sm:$0xff]
        %v335 = vrot.slane %v334, 7
        %v336 = vrot.slane %v334, 1
        %v337 = vmul.f32 %v293, %v335
        %v338 = vmul.f32 %v301, %v334
        %v339 = vadd.f32 %v337, %v338
        %v340 = vmul.f32 %v296, %v336
        %v341 = vadd.f32 %v339, %v340
        %v342 = vadd.f32 %v341, %v306
        %v343 = vmax.f32 %v342, 0.0
        %v344 = vadd.f32 %v332, %v343
        %v345 = vmul.f32 %v344, 0.25
        %v346 = vpack.c.bf16 %v345, %v345
        %vm347 = vcmask 257024
        %348 = vst.msk [vmem:[#allocation4] sm:$0xf] %vm347, %v346
        %v349 = vld [vmem:[%s248] sm:$0xff]
        %v350 = vpack.c.bf16 %v349, %v349
        %351 = vst.msk [vmem:[#allocation3] sm:$0xf] %vm347, %v350
        %v352 = vld [vmem:[#allocation3] sm:$0xf]
        %v353 = vld [vmem:[#allocation10] sm:$0xf]
        %v354 = vld [vmem:[#allocation10 + $0x4] sm:$0xf]
        %v355 = vld [vmem:[#allocation10 + $0x8] sm:$0xf]
        %v356 = vld [vmem:[#allocation10 + $0xc] sm:$0xf]
        %v357 = vld [vmem:[#allocation4] sm:$0xf]
        %v358 = vld [vmem:[#allocation12] sm:$0xf]
        %v359 = vld [vmem:[#allocation12 + $0x4] sm:$0xf]
        %v360 = vld [vmem:[#allocation12 + $0x8] sm:$0xf]
        %v361 = vld [vmem:[#allocation12 + $0xc] sm:$0xf]
        %v366 = vunpack.c.l.b16 %v358
        %v367 = vunpack.c.l.b16 %v359
        %v368 = vunpack.c.l.b16 %v360
        %v369 = vunpack.c.l.b16 %v361
        %v370 = vpack.c.b16 %v367, %v366
        %v371 = vpack.c.b16 %v369, %v368
        %vm374 = vcmask 261120
        %v376 = vsel %vm374, %v357, 0
        %378 = vmatprep.subr.bf16.mxu0 0
        %379 = vmatpush1.bf16.msra.mxu0 %v370
        %380 = vmatprep.subr.bf16.mxu0 0
        %381 = vmatpush1.bf16.msra.mxu0 %v371
        %382 = vmatprep.subr.bf16.mxu0 0
        %383 = vmatpush1.bf16.msra.mxu0 0
        %384 = vmatprep.subr.bf16.mxu0 0
        %385 = vmatpush1.bf16.msra.mxu0 0
        %386 = vmatprep.subr.bf16.mxu0 0
        %387 = vmatpush1.bf16.msra.mxu0 0
        %388 = vmatprep.subr.bf16.mxu0 0
        %389 = vmatpush1.bf16.msra.mxu0 0
        %390 = vmatprep.subr.bf16.mxu0 0
        %391 = vmatpush1.bf16.msra.mxu0 0
        %392 = vmatprep.subr.bf16.mxu0 0
        %393 = vmatpush1.bf16.msra.mxu0 0
        %394 = vmatprep.subr.bf16.mxu0 0
        %395 = vmatpush1.bf16.msra.mxu0 0
        %396 = vmatprep.subr.bf16.mxu0 0
        %397 = vmatpush1.bf16.msra.mxu0 0
        %398 = vmatprep.subr.bf16.mxu0 0
        %399 = vmatpush1.bf16.msra.mxu0 0
        %400 = vmatprep.subr.bf16.mxu0 0
        %401 = vmatpush1.bf16.msra.mxu0 0
        %402 = vmatprep.subr.bf16.mxu0 0
        %403 = vmatpush1.bf16.msra.mxu0 0
        %404 = vmatprep.subr.bf16.mxu0 0
        %405 = vmatpush1.bf16.msra.mxu0 0
        %406 = vmatprep.subr.bf16.mxu0 0
        %407 = vmatpush1.bf16.msra.mxu0 0
        %408 = vmatprep.subr.bf16.mxu0 0
        %409 = vmatpush1.bf16.msra.mxu0 0
        %410 = vmatprep.mubr.bf16.mxu0 0
        %411 = vmatmul.mubr.bf16.gmra.mrb[0].mxu0 %v376
        %v412 = vpop.f32.mrb[0].mxu0
        %v413 = vadd.f32 0.0, %v412
        %v414 = vpop.f32.mrb[0].mxu0
        %v415 = vpop.f32.mrb[0].mxu0
        %v416 = vpop.f32.mrb[0].mxu0
        %417 = vdwg.mxu0
        %v422 = vunpack.c.l.b16 %v353
        %v423 = vunpack.c.l.b16 %v354
        %v424 = vunpack.c.l.b16 %v355
        %v425 = vunpack.c.l.b16 %v356
        %v426 = vpack.c.b16 %v423, %v422
        %v427 = vpack.c.b16 %v425, %v424
        %v431 = vsel %vm374, %v352, 0
        %433 = vmatprep.subr.bf16.mxu0 0
        %434 = vmatpush1.bf16.msra.mxu0 %v426
        %435 = vmatprep.subr.bf16.mxu0 0
        %436 = vmatpush1.bf16.msra.mxu0 %v427
        %437 = vmatprep.subr.bf16.mxu0 0
        %438 = vmatpush1.bf16.msra.mxu0 0
        %439 = vmatprep.subr.bf16.mxu0 0
        %440 = vmatpush1.bf16.msra.mxu0 0
        %441 = vmatprep.subr.bf16.mxu0 0
        %442 = vmatpush1.bf16.msra.mxu0 0
        %443 = vmatprep.subr.bf16.mxu0 0
        %444 = vmatpush1.bf16.msra.mxu0 0
        %445 = vmatprep.subr.bf16.mxu0 0
        %446 = vmatpush1.bf16.msra.mxu0 0
        %447 = vmatprep.subr.bf16.mxu0 0
        %448 = vmatpush1.bf16.msra.mxu0 0
        %449 = vmatprep.subr.bf16.mxu0 0
        %450 = vmatpush1.bf16.msra.mxu0 0
        %451 = vmatprep.subr.bf16.mxu0 0
        %452 = vmatpush1.bf16.msra.mxu0 0
        %453 = vmatprep.subr.bf16.mxu0 0
        %454 = vmatpush1.bf16.msra.mxu0 0
        %455 = vmatprep.subr.bf16.mxu0 0
        %456 = vmatpush1.bf16.msra.mxu0 0
        %457 = vmatprep.subr.bf16.mxu0 0
        %458 = vmatpush1.bf16.msra.mxu0 0
        %459 = vmatprep.subr.bf16.mxu0 0
        %460 = vmatpush1.bf16.msra.mxu0 0
        %461 = vmatprep.subr.bf16.mxu0 0
        %462 = vmatpush1.bf16.msra.mxu0 0
        %463 = vmatprep.subr.bf16.mxu0 0
        %464 = vmatpush1.bf16.msra.mxu0 0
        %465 = vmatprep.mubr.bf16.mxu0 0
        %466 = vmatmul.mubr.bf16.gmra.mrb[0].mxu0 %v431
        %v467 = vpop.f32.mrb[0].mxu0
        %v468 = vadd.f32 %v413, %v467
        %v469 = vpop.f32.mrb[0].mxu0
        %v470 = vpop.f32.mrb[0].mxu0
        %v471 = vpop.f32.mrb[0].mxu0
        %472 = vdwg.mxu0
        %v473 = vld [vmem:[%s4] sm:$0x1]
        %v475 = vlaneseq
        %v476 = vshrl.u32 %v475, 7
        %v477 = vsub.s32 0, %v476
        %v478 = vrot.slane %v473, %v477
        %v480 = vadd.f32 %v468, %v478
        %481 = vst.msk [vmem:[%s283] sm:$0xff] %vm374, %v480
        %s482 = sand.u32 %s142, 1
        %s483 = scalar_lea.sflag [#allocation7], %s482
        %s484 = sand.u32 %s142, 1
        %s485 = smul.addr %s484, 8
        %s486 = scalar_lea.vmem [#allocation13], %s485
        // Predicated region
        $region57: #{tpu_custom_call.1} parent=39 // pred_check
          %p487 = pneg %p152
        $region58: #{tpu_custom_call.1} parent=39 // pred_check_branch
          %489 = sbr.rel (%p487) target = $region60
        $region59: #{tpu_custom_call.1} parent=39 // pred_region
          %s491 = ssub.s32 128, 128
          %492 = vsyncadd %s483, %s491
          %s493 = smul.addr %s24, 128
          %s494 = scalar_lea.hbm %s5, %s493
          %s496 = sshll.u32 %s486, 4
          %s497 = int_to_ptr.vmem [resolvable:$true] %s496
          %499 = dma.vmem_to_hbm [thread:$0]  %s497, 128, %s494, %s483
        $region60: #{tpu_custom_call.1} parent=39 // pred_fallthru
          _
      $region40: #{tpu_custom_call.1} parent=5 // pred_fallthru
        _
      %p500 = scmp.le.s32.totalorder 2, %s19
      // Predicated region
      $region61: #{tpu_custom_call.1} parent=5 // pred_check
        %p501 = pneg %p500
      $region62: #{tpu_custom_call.1} parent=5 // pred_check_branch
        %503 = sbr.rel (%p501) target = $region64
      $region63: #{tpu_custom_call.1} parent=5 // pred_region
        %s504 = ssub.s32 %s19, 2
        // Predicated region
        $region65: #{tpu_custom_call.1} parent=63 // pred_check
          %p505 = pneg %p158
        $region66: #{tpu_custom_call.1} parent=63 // pred_check_branch
          %507 = sbr.rel (%p505) target = $region68
        $region67: #{tpu_custom_call.1} parent=63 // pred_region
          %s508 = sand.u32 %s143, 1
          %s509 = scalar_lea.sflag [#allocation7], %s508
          %s510 = sand.u32 %s143, 1
          %s511 = smul.addr %s510, 8
          %s512 = scalar_lea.vmem [#allocation13], %s511
          %513 = dma.done %s509, 128
        $region68: #{tpu_custom_call.1} parent=63 // pred_fallthru
          _
      $region64: #{tpu_custom_call.1} parent=5 // pred_fallthru
        _
    $region6: #{tpu_custom_call.1} parent=1 // loop_footer
      %s23 = sadd.s32 1, %s19
    $region7: #{tpu_custom_call.1} parent=1 // loop_footer_branch
      %18 = sbr.rel target = $region3
    $region8: #{tpu_custom_call.1} parent=1 // loop_exit
      _
    %514 = vsyncpa [#allocation6], 1
    %s515 = scalar_lea.sflag [#allocation6], 1
    %516 = vsyncpa %s515, 1
    %517 = vsyncpa [#allocation11], 1
    %518 = vsyncpa [#allocation7], 1
    %s519 = scalar_lea.sflag [#allocation7], 1
    %520 = vsyncpa %s519, 1
    %521 = vsyncpa [#allocation8], 1
    %s522 = scalar_lea.sflag [#allocation8], 1
    %523 = vsyncpa %s522, 1

</llo_original>
